<compile_context>
chip_gen: v7x
topology: tpu7x:2x2x1
jax: 0.10.0
libtpu: 0.0.40
codegen_flags: <defaults>
</compile_context>

<pallas_src>
import jax
import jax.numpy as jnp
from jax import lax
from jax.experimental import pallas as pl
from jax.experimental.pallas import tpu as pltpu

INV_W = 25.0
VAR_W = 25.0
COV_W = 1.0
EPS = 1e-4

# Gram contraction over the batch (sublane) dim: x^T x,  (TN,D),(TN,D) -> (D,D).
_GRAM_DN = (((0,), (0,)), ((), ()))


def _vicreg_stream_kernel(x_ref, y_ref, gx_ref, gy_ref, sx_ref, sy_ref, sse_ref):
    step = pl.program_id(1)

    @pl.when(step == 0)
    def _init():
        gx_ref[...] = jnp.zeros_like(gx_ref)
        gy_ref[...] = jnp.zeros_like(gy_ref)
        sx_ref[...] = jnp.zeros_like(sx_ref)
        sy_ref[...] = jnp.zeros_like(sy_ref)
        sse_ref[...] = jnp.zeros_like(sse_ref)

    x = x_ref[...]                       # (TN, D), native dtype -> MXU fast path
    y = y_ref[...]

    # --- MXU: Gram accumulation (native-dtype operands, f32 accumulation) ---
    gx_ref[...] += lax.dot_general(x, x, _GRAM_DN,
                                   preferred_element_type=jnp.float32)
    gy_ref[...] += lax.dot_general(y, y, _GRAM_DN,
                                   preferred_element_type=jnp.float32)

    # --- VPU: column statistics in f32 ---
    x32 = x.astype(jnp.float32)
    y32 = y.astype(jnp.float32)
    sx_ref[...] += jnp.sum(x32, axis=0, keepdims=True)
    sy_ref[...] += jnp.sum(y32, axis=0, keepdims=True)
    dxy = x32 - y32
    sse_ref[...] += jnp.sum(dxy * dxy, axis=0, keepdims=True)


def _finalize(gx, gy, sx, sy, sse, n, d):
    """Combine per-split partials and do the one-shot O(D^2) epilogue in JAX."""
    nf = jnp.float32(n)
    df = jnp.float32(d)
    gx = jnp.sum(gx, axis=0)          # (D, D)
    gy = jnp.sum(gy, axis=0)
    sx = jnp.sum(sx, axis=0)[0]       # (D,)
    sy = jnp.sum(sy, axis=0)[0]
    sse = jnp.sum(sse, axis=0)[0]

    repr_loss = jnp.sum(sse) / (nf * df)

    def branch(g, s):
        mu = s / nf
        cg = g - nf * jnp.outer(mu, mu)          # centered Gram = (N-1) * cov
        var = jnp.diagonal(cg) / (nf - 1.0)      # unbiased variance (pre-eps)
        std = jnp.sqrt(var + EPS)
        std_term = jnp.mean(jnp.maximum(1.0 - std, 0.0)) * 0.5
        cov = cg / (nf - 1.0)
        # off-diagonal sum of squares: diag(cov) == var
        cov_term = (jnp.sum(cov * cov) - jnp.sum(var * var)) / df
        return std_term, cov_term

    std_x_t, cov_x_t = branch(gx, sx)
    std_y_t, cov_y_t = branch(gy, sy)

    std_loss = std_x_t + std_y_t
    cov_loss = cov_x_t + cov_y_t
    loss = INV_W * repr_loss + VAR_W * std_loss + COV_W * cov_loss
    return {
        "loss": loss,
        "not_weighted_inv": repr_loss,
        "not_weighted_var": std_loss,
        "not_weighted_cov": cov_loss,
        "weighted_inv": INV_W * repr_loss,
        "weighted_var": VAR_W * std_loss,
        "weighted_cov": COV_W * cov_loss,
    }


def _round_up(v, m):
    return ((v + m - 1) // m) * m


def vicreg_pallas(x, y, *, tn=None, nsplit=None):
    """x, y: (N, D) arrays (f32 or bf16).  Returns the same dict as the PyTorch module."""
    assert x.shape == y.shape and x.ndim == 2
    n, d = x.shape
    itemsize = jnp.dtype(x.dtype).itemsize
    gran = 16 if itemsize <= 2 else 8            # sublane granularity (bf16 packs 16)

    # --- generation-aware VMEM budget (128 MiB v5e/v6e, 64 MiB per-TC v7x) ---
    try:
        vmem_cap = int(pltpu.get_tpu_info().vmem_capacity_bytes)
    except Exception:
        vmem_cap = 64 << 20                      # conservative fallback
    vmem_budget = max(vmem_cap - (8 << 20), 16 << 20)   # headroom for compiler scratch

    # resident output accumulators (x2 margin for output pipelining) + stat rows
    out_bytes = 2 * (2 * d * d * 4) + 2 * (3 * d * 4)
    # TODO(synk): for very large D (>~2-4K on v7x) tile the (D, D) Gram over output
    # column blocks with an extra grid axis instead of holding it whole in VMEM.
    inp_bytes_per_row = 2 * 2 * d * itemsize     # 2 inputs x double buffer
    tn_vmem = max((vmem_budget - out_bytes) // inp_bytes_per_row, gran)

    if nsplit is None:
        # Leading "parallel" axis: sharded across the 2 TensorCores on v7x,
        # runs sequentially (negligible cost) on single-core v5e/v6e.
        nsplit = 2 if n >= 2 * gran else 1
    if tn is None:
        per_split = -(-n // nsplit)
        tn = int(min(tn_vmem, 2048, _round_up(per_split, gran)))
        tn = max((tn // gran) * gran, gran)
    tn = int(tn)

    steps = -(-n // (nsplit * tn))
    n_pad = nsplit * steps * tn
    if n_pad != n:
        # Zero rows are exactly neutral for every accumulated statistic; the
        # true N is used in the finalize below.
        pad = ((0, n_pad - n), (0, 0))
        x = jnp.pad(x, pad)
        y = jnp.pad(y, pad)

    needed = out_bytes + 2 * (2 * tn * d * itemsize)
    vmem_limit = int(min(vmem_budget, max(2 * needed + (4 << 20), 32 << 20)))

    grid = (nsplit, steps)
    in_spec = pl.BlockSpec((tn, d), lambda c, i: (c * steps + i, 0))
    gram_spec = pl.BlockSpec((pl.Squeezed(), d, d), lambda c, i: (c, 0, 0))
    stat_spec = pl.BlockSpec((pl.Squeezed(), 1, d), lambda c, i: (c, 0, 0))

    gx, gy, sx, sy, sse = pl.pallas_call(
        _vicreg_stream_kernel,
        out_shape=(
            jax.ShapeDtypeStruct((nsplit, d, d), jnp.float32),   # partial Gx
            jax.ShapeDtypeStruct((nsplit, d, d), jnp.float32),   # partial Gy
            jax.ShapeDtypeStruct((nsplit, 1, d), jnp.float32),   # partial sum x
            jax.ShapeDtypeStruct((nsplit, 1, d), jnp.float32),   # partial sum y
            jax.ShapeDtypeStruct((nsplit, 1, d), jnp.float32),   # partial sum (x-y)^2
        ),
        grid_spec=pltpu.PrefetchScalarGridSpec(
            num_scalar_prefetch=0,
            grid=grid,
            in_specs=[in_spec, in_spec],
            out_specs=(gram_spec, gram_spec, stat_spec, stat_spec, stat_spec),
        ),
        compiler_params=pltpu.CompilerParams(
            dimension_semantics=("parallel", "arbitrary"),
            vmem_limit_bytes=vmem_limit),
    )(x, y)

    return _finalize(gx, gy, sx, sy, sse, n, d)


def _vicreg_ref(x, y):
    # pure-JAX reference mirroring the PyTorch module
    n, d = x.shape
    x = x.astype(jnp.float32)
    y = y.astype(jnp.float32)
    repr_loss = jnp.mean((x - y) ** 2)
    xc = x - x.mean(axis=0)
    yc = y - y.mean(axis=0)
    std_x = jnp.sqrt(xc.var(axis=0, ddof=1) + EPS)
    std_y = jnp.sqrt(yc.var(axis=0, ddof=1) + EPS)
    std_loss = jnp.mean(jnp.maximum(1 - std_x, 0)) / 2 + jnp.mean(jnp.maximum(1 - std_y, 0)) / 2
    cov_x = xc.T @ xc / (n - 1)
    cov_y = yc.T @ yc / (n - 1)
    mask = 1.0 - jnp.eye(d)
    cov_loss = jnp.sum((cov_x * mask) ** 2) / d + jnp.sum((cov_y * mask) ** 2) / d
    loss = INV_W * repr_loss + VAR_W * std_loss + COV_W * cov_loss
    return {"loss": loss, "not_weighted_inv": repr_loss,
            "not_weighted_var": std_loss, "not_weighted_cov": cov_loss,
            "weighted_inv": INV_W * repr_loss, "weighted_var": VAR_W * std_loss,
            "weighted_cov": COV_W * cov_loss}


if __name__ == "__main__":
    key = jax.random.PRNGKey(0)
    kx, ky = jax.random.split(key)
    N, D = 32, 32
    x = jax.random.normal(kx, (N, D), dtype=jnp.float32)
    y = 0.9 * x + 0.1 * jax.random.normal(ky, (N, D), dtype=jnp.float32)

    keys = ("loss", "not_weighted_inv", "not_weighted_var", "not_weighted_cov",
            "weighted_inv", "weighted_var", "weighted_cov")

    # Small tile -> grid (2 splits x 2 steps): init / accumulate / split-combine all exercised.
    out = vicreg_pallas(x, y, tn=8)
    jax.block_until_ready(out["loss"])
    ref = _vicreg_ref(x, y)
    for k in keys:
        assert jnp.allclose(out[k], ref[k], rtol=1e-4, atol=1e-4), (k, out[k], ref[k])

    # Awkward N exercises auto tile selection + zero-padded tail path.
    x2, y2 = x[:28], y[:28]
    out2 = vicreg_pallas(x2, y2)
    jax.block_until_ready(out2["loss"])
    ref2 = _vicreg_ref(x2, y2)
    for k in keys:
        assert jnp.allclose(out2[k], ref2[k], rtol=1e-4, atol=1e-4), (k, out2[k], ref2[k])

    print("KERNEL_OK")
</pallas_src>

<mosaic_0001>
module attributes {stable_mosaic.version = 11 : i64} {
  func.func @_vicreg_stream_kernel(%arg0: i32, %arg1: i32, %arg2: memref<8x32xf32, #tpu.memory_space<vmem>>, %arg3: memref<8x32xf32, #tpu.memory_space<vmem>>, %arg4: memref<1x32x32xf32, #tpu.memory_space<vmem>>, %arg5: memref<1x32x32xf32, #tpu.memory_space<vmem>>, %arg6: memref<1x1x32xf32, #tpu.memory_space<vmem>>, %arg7: memref<1x1x32xf32, #tpu.memory_space<vmem>>, %arg8: memref<1x1x32xf32, #tpu.memory_space<vmem>>) attributes {dimension_semantics = [#tpu.dimension_semantics<parallel>, #tpu.dimension_semantics<arbitrary>], iteration_bounds = array<i64: 2, 2>, scalar_prefetch = 0 : i64, scratch_operands = 0 : i64, tpu.core_type = #tpu.core_type<tc>, window_params = [{transform_indices = @transform_0, window_bounds = array<i64: 8, 32>}, {transform_indices = @transform_1, window_bounds = array<i64: 8, 32>}, {transform_indices = @transform_2, window_bounds = array<i64: 1, 32, 32>}, {transform_indices = @transform_3, window_bounds = array<i64: 1, 32, 32>}, {transform_indices = @transform_4, window_bounds = array<i64: 1, 1, 32>}, {transform_indices = @transform_5, window_bounds = array<i64: 1, 1, 32>}, {transform_indices = @transform_6, window_bounds = array<i64: 1, 1, 32>}]} {
    %c0_i32 = arith.constant 0 : i32
    %0 = arith.cmpi eq, %arg1, %c0_i32 : i32
    %1 = arith.extui %0 : i1 to i32
    %c0_i32_0 = arith.constant 0 : i32
    %2 = arith.cmpi ne, %1, %c0_i32_0 : i32
    scf.if %2 {
      %cst_38 = arith.constant 0.000000e+00 : f32
      %45 = vector.broadcast %cst_38 : f32 to vector<32x32xf32>
      %c0_39 = arith.constant 0 : index
      %c0_40 = arith.constant 0 : index
      %c0_41 = arith.constant 0 : index
      %46 = vector.load %arg4[%c0_39, %c0_40, %c0_41] : memref<1x32x32xf32, #tpu.memory_space<vmem>>, vector<1x32x32xf32>
      %47 = vector.shape_cast %46 : vector<1x32x32xf32> to vector<32x32xf32>
      %48 = vector.shape_cast %45 : vector<32x32xf32> to vector<1x32x32xf32>
      tpu.vector_store %arg4[%c0_39, %c0_40, %c0_41], %48 {strides = array<i32>} : memref<1x32x32xf32, #tpu.memory_space<vmem>>, vector<1x32x32xf32>,
      %cst_42 = arith.constant 0.000000e+00 : f32
      %49 = vector.broadcast %cst_42 : f32 to vector<32x32xf32>
      %c0_43 = arith.constant 0 : index
      %c0_44 = arith.constant 0 : index
      %c0_45 = arith.constant 0 : index
      %50 = vector.load %arg5[%c0_43, %c0_44, %c0_45] : memref<1x32x32xf32, #tpu.memory_space<vmem>>, vector<1x32x32xf32>
      %51 = vector.shape_cast %50 : vector<1x32x32xf32> to vector<32x32xf32>
      %52 = vector.shape_cast %49 : vector<32x32xf32> to vector<1x32x32xf32>
      tpu.vector_store %arg5[%c0_43, %c0_44, %c0_45], %52 {strides = array<i32>} : memref<1x32x32xf32, #tpu.memory_space<vmem>>, vector<1x32x32xf32>,
      %cst_46 = arith.constant 0.000000e+00 : f32
      %53 = vector.broadcast %cst_46 : f32 to vector<1x32xf32>
      %c0_47 = arith.constant 0 : index
      %c0_48 = arith.constant 0 : index
      %c0_49 = arith.constant 0 : index
      %54 = vector.load %arg6[%c0_47, %c0_48, %c0_49] : memref<1x1x32xf32, #tpu.memory_space<vmem>>, vector<1x1x32xf32>
      %55 = vector.shape_cast %54 : vector<1x1x32xf32> to vector<1x32xf32>
      %56 = vector.shape_cast %53 : vector<1x32xf32> to vector<1x1x32xf32>
      tpu.vector_store %arg6[%c0_47, %c0_48, %c0_49], %56 {strides = array<i32>} : memref<1x1x32xf32, #tpu.memory_space<vmem>>, vector<1x1x32xf32>,
      %cst_50 = arith.constant 0.000000e+00 : f32
      %57 = vector.broadcast %cst_50 : f32 to vector<1x32xf32>
      %c0_51 = arith.constant 0 : index
      %c0_52 = arith.constant 0 : index
      %c0_53 = arith.constant 0 : index
      %58 = vector.load %arg7[%c0_51, %c0_52, %c0_53] : memref<1x1x32xf32, #tpu.memory_space<vmem>>, vector<1x1x32xf32>
      %59 = vector.shape_cast %58 : vector<1x1x32xf32> to vector<1x32xf32>
      %60 = vector.shape_cast %57 : vector<1x32xf32> to vector<1x1x32xf32>
      tpu.vector_store %arg7[%c0_51, %c0_52, %c0_53], %60 {strides = array<i32>} : memref<1x1x32xf32, #tpu.memory_space<vmem>>, vector<1x1x32xf32>,
      %cst_54 = arith.constant 0.000000e+00 : f32
      %61 = vector.broadcast %cst_54 : f32 to vector<1x32xf32>
      %c0_55 = arith.constant 0 : index
      %c0_56 = arith.constant 0 : index
      %c0_57 = arith.constant 0 : index
      %62 = vector.load %arg8[%c0_55, %c0_56, %c0_57] : memref<1x1x32xf32, #tpu.memory_space<vmem>>, vector<1x1x32xf32>
      %63 = vector.shape_cast %62 : vector<1x1x32xf32> to vector<1x32xf32>
      %64 = vector.shape_cast %61 : vector<1x32xf32> to vector<1x1x32xf32>
      tpu.vector_store %arg8[%c0_55, %c0_56, %c0_57], %64 {strides = array<i32>} : memref<1x1x32xf32, #tpu.memory_space<vmem>>, vector<1x1x32xf32>,
    } else {
    }
    %c0 = arith.constant 0 : index
    %c0_1 = arith.constant 0 : index
    %3 = vector.load %arg2[%c0, %c0_1] : memref<8x32xf32, #tpu.memory_space<vmem>>, vector<8x32xf32>
    %c0_2 = arith.constant 0 : index
    %c0_3 = arith.constant 0 : index
    %4 = vector.load %arg3[%c0_2, %c0_3] : memref<8x32xf32, #tpu.memory_space<vmem>>, vector<8x32xf32>
    %c0_4 = arith.constant 0 : index
    %c0_5 = arith.constant 0 : index
    %c0_6 = arith.constant 0 : index
    %5 = vector.load %arg4[%c0_4, %c0_5, %c0_6] : memref<1x32x32xf32, #tpu.memory_space<vmem>>, vector<1x32x32xf32>
    %6 = vector.shape_cast %5 : vector<1x32x32xf32> to vector<32x32xf32>
    %cst = arith.constant dense<0.000000e+00> : vector<32x32xf32>
    %7 = tpu.matmul %3, %3, %cst {dimension_numbers = #tpu.dot_dimension_numbers<[0], [0], [1], [1], [0, 1, 1, 1], [], []>} : vector<8x32xf32>, vector<8x32xf32>, vector<32x32xf32> -> vector<32x32xf32>
    %8 = arith.addf %6, %7 : vector<32x32xf32>
    %c0_7 = arith.constant 0 : index
    %c0_8 = arith.constant 0 : index
    %c0_9 = arith.constant 0 : index
    %9 = vector.load %arg4[%c0_7, %c0_8, %c0_9] : memref<1x32x32xf32, #tpu.memory_space<vmem>>, vector<1x32x32xf32>
    %10 = vector.shape_cast %9 : vector<1x32x32xf32> to vector<32x32xf32>
    %11 = vector.shape_cast %8 : vector<32x32xf32> to vector<1x32x32xf32>
    tpu.vector_store %arg4[%c0_7, %c0_8, %c0_9], %11 {strides = array<i32>} : memref<1x32x32xf32, #tpu.memory_space<vmem>>, vector<1x32x32xf32>,
    %c0_10 = arith.constant 0 : index
    %c0_11 = arith.constant 0 : index
    %c0_12 = arith.constant 0 : index
    %12 = vector.load %arg5[%c0_10, %c0_11, %c0_12] : memref<1x32x32xf32, #tpu.memory_space<vmem>>, vector<1x32x32xf32>
    %13 = vector.shape_cast %12 : vector<1x32x32xf32> to vector<32x32xf32>
    %cst_13 = arith.constant dense<0.000000e+00> : vector<32x32xf32>
    %14 = tpu.matmul %4, %4, %cst_13 {dimension_numbers = #tpu.dot_dimension_numbers<[0], [0], [1], [1], [0, 1, 1, 1], [], []>} : vector<8x32xf32>, vector<8x32xf32>, vector<32x32xf32> -> vector<32x32xf32>
    %15 = arith.addf %13, %14 : vector<32x32xf32>
    %c0_14 = arith.constant 0 : index
    %c0_15 = arith.constant 0 : index
    %c0_16 = arith.constant 0 : index
    %16 = vector.load %arg5[%c0_14, %c0_15, %c0_16] : memref<1x32x32xf32, #tpu.memory_space<vmem>>, vector<1x32x32xf32>
    %17 = vector.shape_cast %16 : vector<1x32x32xf32> to vector<32x32xf32>
    %18 = vector.shape_cast %15 : vector<32x32xf32> to vector<1x32x32xf32>
    tpu.vector_store %arg5[%c0_14, %c0_15, %c0_16], %18 {strides = array<i32>} : memref<1x32x32xf32, #tpu.memory_space<vmem>>, vector<1x32x32xf32>,
    %c0_17 = arith.constant 0 : index
    %c0_18 = arith.constant 0 : index
    %c0_19 = arith.constant 0 : index
    %19 = vector.load %arg6[%c0_17, %c0_18, %c0_19] : memref<1x1x32xf32, #tpu.memory_space<vmem>>, vector<1x1x32xf32>
    %20 = vector.shape_cast %19 : vector<1x1x32xf32> to vector<1x32xf32>
    %cst_20 = arith.constant dense<0.000000e+00> : vector<32xf32>
    %21 = vector.multi_reduction <add>, %3, %cst_20 [0] : vector<8x32xf32> to vector<32xf32>
    %22 = vector.shape_cast %21 : vector<32xf32> to vector<1x32xf32>
    %23 = arith.addf %20, %22 : vector<1x32xf32>
    %c0_21 = arith.constant 0 : index
    %c0_22 = arith.constant 0 : index
    %c0_23 = arith.constant 0 : index
    %24 = vector.load %arg6[%c0_21, %c0_22, %c0_23] : memref<1x1x32xf32, #tpu.memory_space<vmem>>, vector<1x1x32xf32>
    %25 = vector.shape_cast %24 : vector<1x1x32xf32> to vector<1x32xf32>
    %26 = vector.shape_cast %23 : vector<1x32xf32> to vector<1x1x32xf32>
    tpu.vector_store %arg6[%c0_21, %c0_22, %c0_23], %26 {strides = array<i32>} : memref<1x1x32xf32, #tpu.memory_space<vmem>>, vector<1x1x32xf32>,
    %c0_24 = arith.constant 0 : index
    %c0_25 = arith.constant 0 : index
    %c0_26 = arith.constant 0 : index
    %27 = vector.load %arg7[%c0_24, %c0_25, %c0_26] : memref<1x1x32xf32, #tpu.memory_space<vmem>>, vector<1x1x32xf32>
    %28 = vector.shape_cast %27 : vector<1x1x32xf32> to vector<1x32xf32>
    %cst_27 = arith.constant dense<0.000000e+00> : vector<32xf32>
    %29 = vector.multi_reduction <add>, %4, %cst_27 [0] : vector<8x32xf32> to vector<32xf32>
    %30 = vector.shape_cast %29 : vector<32xf32> to vector<1x32xf32>
    %31 = arith.addf %28, %30 : vector<1x32xf32>
    %c0_28 = arith.constant 0 : index
    %c0_29 = arith.constant 0 : index
    %c0_30 = arith.constant 0 : index
    %32 = vector.load %arg7[%c0_28, %c0_29, %c0_30] : memref<1x1x32xf32, #tpu.memory_space<vmem>>, vector<1x1x32xf32>
    %33 = vector.shape_cast %32 : vector<1x1x32xf32> to vector<1x32xf32>
    %34 = vector.shape_cast %31 : vector<1x32xf32> to vector<1x1x32xf32>
    tpu.vector_store %arg7[%c0_28, %c0_29, %c0_30], %34 {strides = array<i32>} : memref<1x1x32xf32, #tpu.memory_space<vmem>>, vector<1x1x32xf32>,
    %35 = arith.subf %3, %4 : vector<8x32xf32>
    %c0_31 = arith.constant 0 : index
    %c0_32 = arith.constant 0 : index
    %c0_33 = arith.constant 0 : index
    %36 = vector.load %arg8[%c0_31, %c0_32, %c0_33] : memref<1x1x32xf32, #tpu.memory_space<vmem>>, vector<1x1x32xf32>
    %37 = vector.shape_cast %36 : vector<1x1x32xf32> to vector<1x32xf32>
    %38 = arith.mulf %35, %35 : vector<8x32xf32>
    %cst_34 = arith.constant dense<0.000000e+00> : vector<32xf32>
    %39 = vector.multi_reduction <add>, %38, %cst_34 [0] : vector<8x32xf32> to vector<32xf32>
    %40 = vector.shape_cast %39 : vector<32xf32> to vector<1x32xf32>
    %41 = arith.addf %37, %40 : vector<1x32xf32>
    %c0_35 = arith.constant 0 : index
    %c0_36 = arith.constant 0 : index
    %c0_37 = arith.constant 0 : index
    %42 = vector.load %arg8[%c0_35, %c0_36, %c0_37] : memref<1x1x32xf32, #tpu.memory_space<vmem>>, vector<1x1x32xf32>
    %43 = vector.shape_cast %42 : vector<1x1x32xf32> to vector<1x32xf32>
    %44 = vector.shape_cast %41 : vector<1x32xf32> to vector<1x1x32xf32>
    tpu.vector_store %arg8[%c0_35, %c0_36, %c0_37], %44 {strides = array<i32>} : memref<1x1x32xf32, #tpu.memory_space<vmem>>, vector<1x1x32xf32>,
    return
  }
  func.func @transform_0(%arg0: i32, %arg1: i32) -> (i32, i32) {
    %c2_i32 = arith.constant 2 : i32
    %0 = arith.muli %arg0, %c2_i32 : i32
    %1 = arith.addi %0, %arg1 : i32
    %c0_i32 = arith.constant 0 : i32
    %c0_i32_0 = arith.constant 0 : i32
    return %1, %c0_i32 : i32, i32
  }
  func.func @transform_1(%arg0: i32, %arg1: i32) -> (i32, i32) {
    %c2_i32 = arith.constant 2 : i32
    %0 = arith.muli %arg0, %c2_i32 : i32
    %1 = arith.addi %0, %arg1 : i32
    %c0_i32 = arith.constant 0 : i32
    %c0_i32_0 = arith.constant 0 : i32
    return %1, %c0_i32 : i32, i32
  }
  func.func @transform_2(%arg0: i32, %arg1: i32) -> (i32, i32, i32) {
    %c0_i32 = arith.constant 0 : i32
    %c0_i32_0 = arith.constant 0 : i32
    %c0_i32_1 = arith.constant 0 : i32
    return %arg0, %c0_i32, %c0_i32_0 : i32, i32, i32
  }
  func.func @transform_3(%arg0: i32, %arg1: i32) -> (i32, i32, i32) {
    %c0_i32 = arith.constant 0 : i32
    %c0_i32_0 = arith.constant 0 : i32
    %c0_i32_1 = arith.constant 0 : i32
    return %arg0, %c0_i32, %c0_i32_0 : i32, i32, i32
  }
  func.func @transform_4(%arg0: i32, %arg1: i32) -> (i32, i32, i32) {
    %c0_i32 = arith.constant 0 : i32
    %c0_i32_0 = arith.constant 0 : i32
    %c0_i32_1 = arith.constant 0 : i32
    return %arg0, %c0_i32, %c0_i32_0 : i32, i32, i32
  }
  func.func @transform_5(%arg0: i32, %arg1: i32) -> (i32, i32, i32) {
    %c0_i32 = arith.constant 0 : i32
    %c0_i32_0 = arith.constant 0 : i32
    %c0_i32_1 = arith.constant 0 : i32
    return %arg0, %c0_i32, %c0_i32_0 : i32, i32, i32
  }
  func.func @transform_6(%arg0: i32, %arg1: i32) -> (i32, i32, i32) {
    %c0_i32 = arith.constant 0 : i32
    %c0_i32_0 = arith.constant 0 : i32
    %c0_i32_1 = arith.constant 0 : i32
    return %arg0, %c0_i32, %c0_i32_0 : i32, i32, i32
  }
}

</mosaic_0001>

<llo_original>
// kernel: tpu_custom_call.1
$region0: #{tpu_custom_call.1}
  #allocation0 [shape = 'u32[]', space=smem, size = 0x4, offset = 0x4, fixed_abs, tag = 'smem constant byte address 0x4 - core index']
  #allocation1 [shape = 'u32[144,128]{1,0:T(1,128)}', space=vmem, size = 0x12000, scoped, tag = 'internal scratch']
  %s0 = inlined_call_operand.hbm [shape: f32[32,32], index: 0, kind: input, shape index: {}]
  %s1 = inlined_call_operand.hbm [shape: f32[32,32], index: 1, kind: input, shape index: {}]
  %s2 = inlined_call_operand.hbm [shape: f32[2,32,32], index: 2, kind: output, shape index: {0}]
  %s3 = inlined_call_operand.hbm [shape: f32[2,32,32], index: 3, kind: output, shape index: {1}]
  %s4 = inlined_call_operand.hbm [shape: f32[2,1,32], index: 4, kind: output, shape index: {2}]
  %s5 = inlined_call_operand.hbm [shape: f32[2,1,32], index: 5, kind: output, shape index: {3}]
  %s6 = inlined_call_operand.hbm [shape: f32[2,1,32], index: 6, kind: output, shape index: {4}]
  %7 = xla_tuple %s2, %s3, %s4, %s5, %s6
  %s8 = sld [smem:[#allocation0]]
  $region85: #{tpu_custom_call.1} parent=0
    _
  %s10 = ssub.s32 1, %s8
  %s11 = scalar_select 0, %s10, %s8
  $region1: #{tpu_custom_call.1} parent=0
    #allocation2 [shape = 'u8[8192]{0}', space=vmem, size = 0x2000, scoped, tag = 'input window, operand 0']
    #allocation3 [shape = 's32[2]{0}', space=sflag, size = 0x8, scoped, tag = 'scoped memory for tpu_custom_call.1']
    #allocation4 [shape = 's32[2]{0}', space=sflag, size = 0x8, scoped, tag = 'scoped memory for tpu_custom_call.1']
    #allocation5 [shape = 'u8[8192]{0}', space=vmem, size = 0x2000, scoped, tag = 'input window, operand 1']
    #allocation6 [shape = 's32[2]{0}', space=sflag, size = 0x8, scoped, tag = 'scoped memory for tpu_custom_call.1']
    #allocation7 [shape = 'u8[32768]{0}', space=vmem, size = 0x8000, scoped, tag = 'output window, operand 0']
    #allocation8 [shape = 'u8[32768]{0}', space=vmem, size = 0x8000, scoped, tag = 'output window, operand 1']
    #allocation9 [shape = 's32[2]{0}', space=sflag, size = 0x8, scoped, tag = 'scoped memory for tpu_custom_call.1']
    #allocation10 [shape = 'u8[1024]{0}', space=vmem, size = 0x400, scoped, tag = 'output window, operand 2']
    #allocation11 [shape = 'u8[1024]{0}', space=vmem, size = 0x400, scoped, tag = 'output window, operand 3']
    #allocation12 [shape = 's32[2]{0}', space=sflag, size = 0x8, scoped, tag = 'scoped memory for tpu_custom_call.1']
    #allocation13 [shape = 'u8[1024]{0}', space=vmem, size = 0x400, scoped, tag = 'output window, operand 4']
    %12 = vsyncpa [#allocation3], 0
    %s13 = scalar_lea.sflag [#allocation3], 1
    %14 = vsyncpa %s13, 0
    %15 = vsyncpa [#allocation6], 0
    %s16 = scalar_lea.sflag [#allocation6], 1
    %17 = vsyncpa %s16, 0
    %18 = vsyncpa [#allocation4], 0
    %s19 = scalar_lea.sflag [#allocation4], 1
    %20 = vsyncpa %s19, 0
    %21 = vsyncpa [#allocation9], 0
    %s22 = scalar_lea.sflag [#allocation9], 1
    %23 = vsyncpa %s22, 0
    %24 = vsyncpa [#allocation12], 0
    %s25 = scalar_lea.sflag [#allocation12], 1
    %26 = vsyncpa %s25, 0
    loop: start=0, step=1, limit=6
    $region2: #{tpu_custom_call.1} parent=1 // loop_pre_header
      _
    $region3: #{tpu_custom_call.1} parent=1 // loop_header
      %s28 = sphi 0, %s32
      %p29 = scmp.ge.s32.totalorder %s28, 6
      %s35 = sphi 0, %s47
      %s36 = sphi 0, %s43
      %s37 = sphi 0, %s35
      %s38 = sphi 0, %s36
      %s39 = sphi 0, %s37
      %s40 = sphi 0, %s38
      %s54 = sphi 0, %s56
      %s57 = sphi 0, %s54
      %s58 = sphi 0, %s57
      %s74 = sphi 0, %s58
      %s84 = sphi 0, %s86
      %s87 = sphi 0, %s84
      %s88 = sphi 0, %s87
      %s104 = sphi 0, %s88
      %s110 = sphi 0, %s112
      %s113 = sphi 0, %s110
      %s114 = sphi 0, %s113
      %s130 = sphi 0, %s114
      %s136 = sphi 0, %s138
      %s139 = sphi 0, %s136
      %s140 = sphi 0, %s139
      %s156 = sphi 0, %s140
      %s162 = sphi 0, %s164
      %s165 = sphi 0, %s162
      %s166 = sphi 0, %s165
      %s182 = sphi 0, %s166
      %s188 = sphi 0, %s190
      %s191 = sphi 0, %s188
      %s192 = sphi 0, %s191
      %s208 = sphi 0, %s192
      %s214 = sphi 0, %s216
      %s217 = sphi 0, %s214
      %s218 = sphi 0, %s217
      %s234 = sphi 0, %s218
    $region4: #{tpu_custom_call.1} parent=1 // loop_header_branch
      %31 = sbr.rel (%p29) target = $region8
    $region5: #{tpu_custom_call.1} parent=1 // loop_body
      %s33 = ssub.s32 %s28, 1
      %s34 = ssub.s32 %s28, 2
      %s41 = sadd.s32 1, %s36
      %p42 = scmp.ge.s32.totalorder %s41, 2
      %s43 = scalar_select %p42, 0, %s41
      %s44 = sadd.s32 1, %s35
      %s45 = scalar_select %p42, %s44, %s35
      %p46 = scmp.ge.s32.totalorder %s45, 2
      %s47 = scalar_select %p46, 0, %s45
      %s48 = smul.u32 %s35, 2
      %s49 = sadd.s32 %s48, %s36
      %s50 = smul.u32 %s47, 2
      %s51 = sadd.s32 %s50, %s43
      %s52 = ssub.s32 %s49, %s51
      %p53 = scmp.eq.s32.totalorder %s52, 0
      %s55 = sadd.s32 %s54, 1
      %s56 = scalar_select %p53, %s54, %s55
      %p59 = pneg %p53
      %p60 = scmp.eq.s32.totalorder %s28, 3
      %p61 = por %p59, %p60
      %p62 = scmp.ne.s32.totalorder %s54, %s57
      %p63 = scmp.eq.s32.totalorder %s28, 0
      %p64 = por %p62, %p63
      %p65 = scmp.ne.s32.totalorder %s54, %s57
      %p66 = scmp.eq.s32.totalorder %s33, 3
      %p67 = por %p65, %p66
      %p68 = scmp.ne.s32.totalorder %s57, %s58
      %p69 = scmp.eq.s32.totalorder %s33, 0
      %p70 = por %p68, %p69
      %p71 = scmp.ne.s32.totalorder %s57, %s58
      %p72 = scmp.eq.s32.totalorder %s34, 3
      %p73 = por %p71, %p72
      %p75 = scmp.ne.s32.totalorder %s58, %s74
      %p76 = scmp.eq.s32.totalorder %s34, 0
      %p77 = por %p75, %p76
      %s78 = smul.u32 %s35, 2
      %s79 = sadd.s32 %s78, %s36
      %s80 = smul.u32 %s47, 2
      %s81 = sadd.s32 %s80, %s43
      %s82 = ssub.s32 %s79, %s81
      %p83 = scmp.eq.s32.totalorder %s82, 0
      %s85 = sadd.s32 %s84, 1
      %s86 = scalar_select %p83, %s84, %s85
      %p89 = pneg %p83
      %p90 = scmp.eq.s32.totalorder %s28, 3
      %p91 = por %p89, %p90
      %p92 = scmp.ne.s32.totalorder %s84, %s87
      %p93 = scmp.eq.s32.totalorder %s28, 0
      %p94 = por %p92, %p93
      %p95 = scmp.ne.s32.totalorder %s84, %s87
      %p96 = scmp.eq.s32.totalorder %s33, 3
      %p97 = por %p95, %p96
      %p98 = scmp.ne.s32.totalorder %s87, %s88
      %p99 = scmp.eq.s32.totalorder %s33, 0
      %p100 = por %p98, %p99
      %p101 = scmp.ne.s32.totalorder %s87, %s88
      %p102 = scmp.eq.s32.totalorder %s34, 3
      %p103 = por %p101, %p102
      %p105 = scmp.ne.s32.totalorder %s88, %s104
      %p106 = scmp.eq.s32.totalorder %s34, 0
      %p107 = por %p105, %p106
      %s108 = ssub.s32 %s35, %s47
      %p109 = scmp.eq.s32.totalorder %s108, 0
      %s111 = sadd.s32 %s110, 1
      %s112 = scalar_select %p109, %s110, %s111
      %p115 = pneg %p109
      %p116 = scmp.eq.s32.totalorder %s28, 3
      %p117 = por %p115, %p116
      %p118 = scmp.ne.s32.totalorder %s110, %s113
      %p119 = scmp.eq.s32.totalorder %s28, 0
      %p120 = por %p118, %p119
      %p121 = scmp.ne.s32.totalorder %s110, %s113
      %p122 = scmp.eq.s32.totalorder %s33, 3
      %p123 = por %p121, %p122
      %p124 = scmp.ne.s32.totalorder %s113, %s114
      %p125 = scmp.eq.s32.totalorder %s33, 0
      %p126 = por %p124, %p125
      %p127 = scmp.ne.s32.totalorder %s113, %s114
      %p128 = scmp.eq.s32.totalorder %s34, 3
      %p129 = por %p127, %p128
      %p131 = scmp.ne.s32.totalorder %s114, %s130
      %p132 = scmp.eq.s32.totalorder %s34, 0
      %p133 = por %p131, %p132
      %s134 = ssub.s32 %s35, %s47
      %p135 = scmp.eq.s32.totalorder %s134, 0
      %s137 = sadd.s32 %s136, 1
      %s138 = scalar_select %p135, %s136, %s137
      %p141 = pneg %p135
      %p142 = scmp.eq.s32.totalorder %s28, 3
      %p143 = por %p141, %p142
      %p144 = scmp.ne.s32.totalorder %s136, %s139
      %p145 = scmp.eq.s32.totalorder %s28, 0
      %p146 = por %p144, %p145
      %p147 = scmp.ne.s32.totalorder %s136, %s139
      %p148 = scmp.eq.s32.totalorder %s33, 3
      %p149 = por %p147, %p148
      %p150 = scmp.ne.s32.totalorder %s139, %s140
      %p151 = scmp.eq.s32.totalorder %s33, 0
      %p152 = por %p150, %p151
      %p153 = scmp.ne.s32.totalorder %s139, %s140
      %p154 = scmp.eq.s32.totalorder %s34, 3
      %p155 = por %p153, %p154
      %p157 = scmp.ne.s32.totalorder %s140, %s156
      %p158 = scmp.eq.s32.totalorder %s34, 0
      %p159 = por %p157, %p158
      %s160 = ssub.s32 %s35, %s47
      %p161 = scmp.eq.s32.totalorder %s160, 0
      %s163 = sadd.s32 %s162, 1
      %s164 = scalar_select %p161, %s162, %s163
      %p167 = pneg %p161
      %p168 = scmp.eq.s32.totalorder %s28, 3
      %p169 = por %p167, %p168
      %p170 = scmp.ne.s32.totalorder %s162, %s165
      %p171 = scmp.eq.s32.totalorder %s28, 0
      %p172 = por %p170, %p171
      %p173 = scmp.ne.s32.totalorder %s162, %s165
      %p174 = scmp.eq.s32.totalorder %s33, 3
      %p175 = por %p173, %p174
      %p176 = scmp.ne.s32.totalorder %s165, %s166
      %p177 = scmp.eq.s32.totalorder %s33, 0
      %p178 = por %p176, %p177
      %p179 = scmp.ne.s32.totalorder %s165, %s166
      %p180 = scmp.eq.s32.totalorder %s34, 3
      %p181 = por %p179, %p180
      %p183 = scmp.ne.s32.totalorder %s166, %s182
      %p184 = scmp.eq.s32.totalorder %s34, 0
      %p185 = por %p183, %p184
      %s186 = ssub.s32 %s35, %s47
      %p187 = scmp.eq.s32.totalorder %s186, 0
      %s189 = sadd.s32 %s188, 1
      %s190 = scalar_select %p187, %s188, %s189
      %p193 = pneg %p187
      %p194 = scmp.eq.s32.totalorder %s28, 3
      %p195 = por %p193, %p194
      %p196 = scmp.ne.s32.totalorder %s188, %s191
      %p197 = scmp.eq.s32.totalorder %s28, 0
      %p198 = por %p196, %p197
      %p199 = scmp.ne.s32.totalorder %s188, %s191
      %p200 = scmp.eq.s32.totalorder %s33, 3
      %p201 = por %p199, %p200
      %p202 = scmp.ne.s32.totalorder %s191, %s192
      %p203 = scmp.eq.s32.totalorder %s33, 0
      %p204 = por %p202, %p203
      %p205 = scmp.ne.s32.totalorder %s191, %s192
      %p206 = scmp.eq.s32.totalorder %s34, 3
      %p207 = por %p205, %p206
      %p209 = scmp.ne.s32.totalorder %s192, %s208
      %p210 = scmp.eq.s32.totalorder %s34, 0
      %p211 = por %p209, %p210
      %s212 = ssub.s32 %s35, %s47
      %p213 = scmp.eq.s32.totalorder %s212, 0
      %s215 = sadd.s32 %s214, 1
      %s216 = scalar_select %p213, %s214, %s215
      %p219 = pneg %p213
      %p220 = scmp.eq.s32.totalorder %s28, 3
      %p221 = por %p219, %p220
      %p222 = scmp.ne.s32.totalorder %s214, %s217
      %p223 = scmp.eq.s32.totalorder %s28, 0
      %p224 = por %p222, %p223
      %p225 = scmp.ne.s32.totalorder %s214, %s217
      %p226 = scmp.eq.s32.totalorder %s33, 3
      %p227 = por %p225, %p226
      %p228 = scmp.ne.s32.totalorder %s217, %s218
      %p229 = scmp.eq.s32.totalorder %s33, 0
      %p230 = por %p228, %p229
      %p231 = scmp.ne.s32.totalorder %s217, %s218
      %p232 = scmp.eq.s32.totalorder %s34, 3
      %p233 = por %p231, %p232
      %p235 = scmp.ne.s32.totalorder %s218, %s234
      %p236 = scmp.eq.s32.totalorder %s34, 0
      %p237 = por %p235, %p236
      %p238 = scmp.le.s32.totalorder 1, %s28
      %p239 = scmp.lt.s32.totalorder %s28, 5
      %p240 = pnand %p238, %p239
      %p241 = pneg %p240
      // Predicated region
      $region9: #{tpu_custom_call.1} parent=5 // pred_check
        _
      $region10: #{tpu_custom_call.1} parent=5 // pred_check_branch
        %243 = sbr.rel (%p240) target = $region12
      $region11: #{tpu_custom_call.1} parent=5 // pred_region
        %s244 = ssub.s32 %s28, 1
      $region12: #{tpu_custom_call.1} parent=5 // pred_fallthru
        _
      %p245 = scmp.lt.s32.totalorder %s28, 4
      // Predicated region
      $region13: #{tpu_custom_call.1} parent=5 // pred_check
        %p246 = pneg %p245
      $region14: #{tpu_custom_call.1} parent=5 // pred_check_branch
        %248 = sbr.rel (%p246) target = $region16
      $region15: #{tpu_custom_call.1} parent=5 // pred_region
        // Predicated region
        $region17: #{tpu_custom_call.1} parent=15 // pred_check
          %p249 = pneg %p64
        $region18: #{tpu_custom_call.1} parent=15 // pred_check_branch
          %251 = sbr.rel (%p249) target = $region20
        $region19: #{tpu_custom_call.1} parent=15 // pred_region
          %s252 = sand.u32 %s54, 1
          %s253 = scalar_lea.sflag [#allocation3], %s252
          %s254 = sand.u32 %s54, 1
          %s255 = smul.addr %s254, 8
          %s256 = scalar_lea.vmem [#allocation2], %s255
          %s257 = smul.u32 %s35, 2
          %s258 = sadd.s32 %s257, %s36
          %s260 = ssub.s32 128, 128
          %261 = vsyncadd %s253, %s260
          %s262 = smul.addr %s258, 128
          %s263 = scalar_lea.hbm %s0, %s262
          %s265 = sshll.u32 %s256, 4
          %s266 = int_to_ptr.vmem [resolvable:$true] %s265
          %268 = dma.hbm_to_vmem [thread:$0]  %s263, 128, %s266, %s253
        $region20: #{tpu_custom_call.1} parent=15 // pred_fallthru
          _
        // Predicated region
        $region21: #{tpu_custom_call.1} parent=15 // pred_check
          %p269 = pneg %p94
        $region22: #{tpu_custom_call.1} parent=15 // pred_check_branch
          %271 = sbr.rel (%p269) target = $region24
        $region23: #{tpu_custom_call.1} parent=15 // pred_region
          %s272 = sand.u32 %s84, 1
          %s273 = scalar_lea.sflag [#allocation6], %s272
          %s274 = sand.u32 %s84, 1
          %s275 = smul.addr %s274, 8
          %s276 = scalar_lea.vmem [#allocation5], %s275
          %s277 = smul.u32 %s35, 2
          %s278 = sadd.s32 %s277, %s36
          %s280 = ssub.s32 128, 128
          %281 = vsyncadd %s273, %s280
          %s282 = smul.addr %s278, 128
          %s283 = scalar_lea.hbm %s1, %s282
          %s285 = sshll.u32 %s276, 4
          %s286 = int_to_ptr.vmem [resolvable:$true] %s285
          %288 = dma.hbm_to_vmem [thread:$0]  %s283, 128, %s286, %s273
        $region24: #{tpu_custom_call.1} parent=15 // pred_fallthru
          _
      $region16: #{tpu_custom_call.1} parent=5 // pred_fallthru
        _
      %p289 = scmp.le.s32.totalorder 1, %s28
      %p290 = scmp.lt.s32.totalorder %s28, 5
      %p291 = pnand %p289, %p290
      %p292 = pneg %p291
      // Predicated region
      $region25: #{tpu_custom_call.1} parent=5 // pred_check
        _
      $region26: #{tpu_custom_call.1} parent=5 // pred_check_branch
        %294 = sbr.rel (%p291) target = $region28
      $region27: #{tpu_custom_call.1} parent=5 // pred_region
        %s295 = ssub.s32 %s28, 1
        %s296 = sand.u32 %s57, 1
        %s297 = scalar_lea.sflag [#allocation3], %s296
        %s298 = sand.u32 %s57, 1
        %s299 = smul.addr %s298, 8
        %s300 = scalar_lea.vmem [#allocation2], %s299
        // Predicated region
        $region29: #{tpu_custom_call.1} parent=27 // pred_check
          %p301 = pneg %p70
        $region30: #{tpu_custom_call.1} parent=27 // pred_check_branch
          %303 = sbr.rel (%p301) target = $region32
        $region31: #{tpu_custom_call.1} parent=27 // pred_region
          %304 = dma.done %s297, 128
        $region32: #{tpu_custom_call.1} parent=27 // pred_fallthru
          _
        %s305 = sand.u32 %s87, 1
        %s306 = scalar_lea.sflag [#allocation6], %s305
        %s307 = sand.u32 %s87, 1
        %s308 = smul.addr %s307, 8
        %s309 = scalar_lea.vmem [#allocation5], %s308
        // Predicated region
        $region33: #{tpu_custom_call.1} parent=27 // pred_check
          %p310 = pneg %p100
        $region34: #{tpu_custom_call.1} parent=27 // pred_check_branch
          %312 = sbr.rel (%p310) target = $region36
        $region35: #{tpu_custom_call.1} parent=27 // pred_region
          %313 = dma.done %s306, 128
        $region36: #{tpu_custom_call.1} parent=27 // pred_fallthru
          _
        %s314 = sand.u32 %s57, 1
        %s315 = scalar_lea.sflag [#allocation3], %s314
        %s316 = sand.u32 %s57, 1
        %s317 = smul.addr %s316, 8
        %s318 = scalar_lea.vmem [#allocation2], %s317
        %p319 = pneg %p70
        %p320 = pneg %p67
        %s321 = sand.u32 %s87, 1
        %s322 = scalar_lea.sflag [#allocation6], %s321
        %s323 = sand.u32 %s87, 1
        %s324 = smul.addr %s323, 8
        %s325 = scalar_lea.vmem [#allocation5], %s324
        %p326 = pneg %p100
        %p327 = pneg %p97
        %p328 = pneg %p126
        %p329 = pneg %p123
        %s330 = sand.u32 %s113, 1
        %s331 = scalar_lea.sflag [#allocation4], %s330
        %s332 = sand.u32 %s113, 1
        %s333 = smul.addr %s332, 32
        %s334 = scalar_lea.vmem [#allocation7], %s333
        %p335 = pneg %p152
        %p336 = pneg %p149
        %s337 = sand.u32 %s33, 1
        %s338 = scalar_lea.sflag [#allocation9], %s337
        %s339 = sand.u32 %s139, 1
        %s340 = smul.addr %s339, 32
        %s341 = scalar_lea.vmem [#allocation8], %s340
        %p342 = pneg %p178
        %p343 = pneg %p175
        %s344 = sand.u32 %s33, 1
        %s345 = scalar_lea.sflag [#allocation9], %s344
        %s346 = sand.u32 %s165, 1
        %s347 = scalar_lea.vmem [#allocation10], %s346
        %p348 = pneg %p204
        %p349 = pneg %p201
        %s350 = sand.u32 %s33, 1
        %s351 = scalar_lea.sflag [#allocation12], %s350
        %s352 = sand.u32 %s191, 1
        %s353 = scalar_lea.vmem [#allocation11], %s352
        %p354 = pneg %p230
        %p355 = pneg %p227
        %s356 = sand.u32 %s33, 1
        %s357 = scalar_lea.sflag [#allocation12], %s356
        %s358 = sand.u32 %s217, 1
        %s359 = scalar_lea.vmem [#allocation13], %s358
        %s360 = smul.u32 %s37, 2
        %s361 = sadd.s32 %s360, %s38
        %s362 = smul.u32 %s37, 2
        %s363 = sadd.s32 %s362, %s38
        %p364 = scmp.eq.s32.totalorder %s38, 0
        // Predicated region
        $region37: #{tpu_custom_call.1} parent=27 // pred_check
          %p365 = pneg %p364
        $region38: #{tpu_custom_call.1} parent=27 // pred_check_branch
          %367 = sbr.rel (%p365) target = $region40
        $region39: #{tpu_custom_call.1} parent=27 // pred_region
          %vm368 = vcmask 261120
          %369 = vst.msk [vmem:[%s334] sm:$0xff] %vm368, 0.0
          %370 = vst.msk [vmem:[%s334 + $0x8] sm:$0xff] %vm368, 0.0
          %371 = vst.msk [vmem:[%s334 + $0x10] sm:$0xff] %vm368, 0.0
          %372 = vst.msk [vmem:[%s334 + $0x18] sm:$0xff] %vm368, 0.0
          %373 = vst.msk [vmem:[%s341] sm:$0xff] %vm368, 0.0
          %374 = vst.msk [vmem:[%s341 + $0x8] sm:$0xff] %vm368, 0.0
          %375 = vst.msk [vmem:[%s341 + $0x10] sm:$0xff] %vm368, 0.0
          %376 = vst.msk [vmem:[%s341 + $0x18] sm:$0xff] %vm368, 0.0
          %vm377 = vcmask 253952
          %378 = vst.msk [vmem:[%s347] sm:$0x1] %vm377, 0.0
          %379 = vst.msk [vmem:[%s353] sm:$0x1] %vm377, 0.0
          %380 = vst.msk [vmem:[%s359] sm:$0x1] %vm377, 0.0
        $region40: #{tpu_custom_call.1} parent=27 // pred_fallthru
          _
        %v381 = vld [vmem:[%s300] sm:$0xff]
        %v382 = vld [vmem:[%s309] sm:$0xff]
        %v383 = vld [vmem:[%s334] sm:$0xff]
        %v384 = vld [vmem:[%s334 + $0x8] sm:$0xff]
        %v385 = vld [vmem:[%s334 + $0x10] sm:$0xff]
        %v386 = vld [vmem:[%s334 + $0x18] sm:$0xff]
        %387 = vxpose.xlu0.b32.start [1/16] %v381, 128
        %388 = vxpose.xlu0.b32.cont [2/16] 0.0, 128
        %389 = vxpose.xlu0.b32.cont [3/16] 0.0, 128
        %390 = vxpose.xlu0.b32.cont [4/16] 0.0, 128
        %391 = vxpose.xlu0.b32.cont [5/16] 0.0, 128
        %392 = vxpose.xlu0.b32.cont [6/16] 0.0, 128
        %393 = vxpose.xlu0.b32.cont [7/16] 0.0, 128
        %394 = vxpose.xlu0.b32.cont [8/16] 0.0, 128
        %395 = vxpose.xlu0.b32.cont [9/16] 0.0, 128
        %396 = vxpose.xlu0.b32.cont [10/16] 0.0, 128
        %397 = vxpose.xlu0.b32.cont [11/16] 0.0, 128
        %398 = vxpose.xlu0.b32.cont [12/16] 0.0, 128
        %399 = vxpose.xlu0.b32.cont [13/16] 0.0, 128
        %400 = vxpose.xlu0.b32.cont [14/16] 0.0, 128
        %401 = vxpose.xlu0.b32.cont [15/16] 0.0, 128
        %402 = vxpose.xlu0.b32.end [16/16] 0.0, 128
        %v403 = vpop.trf.xlu0
        %v404 = vpop.trf.xlu0
        %v405 = vpop.trf.xlu0
        %v406 = vpop.trf.xlu0
        %v407 = vpop.trf.xlu0
        %v408 = vpop.trf.xlu0
        %v409 = vpop.trf.xlu0
        %v410 = vpop.trf.xlu0
        %v411 = vpop.trf.xlu0
        %v412 = vpop.trf.xlu0
        %v413 = vpop.trf.xlu0
        %v414 = vpop.trf.xlu0
        %v415 = vpop.trf.xlu0
        %v416 = vpop.trf.xlu0
        %v417 = vpop.trf.xlu0
        %v418 = vpop.trf.xlu0
        %vm419 = vcmask 64512
        %v421 = vsel %vm419, %v403, 0
        %v424 = vsel %vm419, %v404, 0
        %v427 = vsel %vm419, %v405, 0
        %v430 = vsel %vm419, %v406, 0
        %432 = vmatprep.subr.mxu0 0.0
        %433 = vmatpush1.msra.mxu0 %v381
        %434 = vmatprep.subr.mxu0 0.0
        %435 = vmatpush1.msra.mxu0 0.0
        %436 = vmatprep.subr.mxu0 0.0
        %437 = vmatpush1.msra.mxu0 0.0
        %438 = vmatprep.subr.mxu0 0.0
        %439 = vmatpush1.msra.mxu0 0.0
        %440 = vmatprep.subr.mxu0 0.0
        %441 = vmatpush1.msra.mxu0 0.0
        %442 = vmatprep.subr.mxu0 0.0
        %443 = vmatpush1.msra.mxu0 0.0
        %444 = vmatprep.subr.mxu0 0.0
        %445 = vmatpush1.msra.mxu0 0.0
        %446 = vmatprep.subr.mxu0 0.0
        %447 = vmatpush1.msra.mxu0 0.0
        %448 = vmatprep.subr.mxu0 0.0
        %449 = vmatpush1.msra.mxu0 0.0
        %450 = vmatprep.subr.mxu0 0.0
        %451 = vmatpush1.msra.mxu0 0.0
        %452 = vmatprep.subr.mxu0 0.0
        %453 = vmatpush1.msra.mxu0 0.0
        %454 = vmatprep.subr.mxu0 0.0
        %455 = vmatpush1.msra.mxu0 0.0
        %456 = vmatprep.subr.mxu0 0.0
        %457 = vmatpush1.msra.mxu0 0.0
        %458 = vmatprep.subr.mxu0 0.0
        %459 = vmatpush1.msra.mxu0 0.0
        %460 = vmatprep.subr.mxu0 0.0
        %461 = vmatpush1.msra.mxu0 0.0
        %462 = vmatprep.subr.mxu0 0.0
        %463 = vmatpush1.msra.mxu0 0.0
        %464 = vmatprep.subr.mxu0 0.0
        %465 = vmatpush1.msra.mxu0 0.0
        %466 = vmatprep.subr.mxu0 0.0
        %467 = vmatpush1.msra.mxu0 0.0
        %468 = vmatprep.subr.mxu0 0.0
        %469 = vmatpush1.msra.mxu0 0.0
        %470 = vmatprep.subr.mxu0 0.0
        %471 = vmatpush1.msra.mxu0 0.0
        %472 = vmatprep.subr.mxu0 0.0
        %473 = vmatpush1.msra.mxu0 0.0
        %474 = vmatprep.subr.mxu0 0.0
        %475 = vmatpush1.msra.mxu0 0.0
        %476 = vmatprep.subr.mxu0 0.0
        %477 = vmatpush1.msra.mxu0 0.0
        %478 = vmatprep.subr.mxu0 0.0
        %479 = vmatpush1.msra.mxu0 0.0
        %480 = vmatprep.subr.mxu0 0.0
        %481 = vmatpush1.msra.mxu0 0.0
        %482 = vmatprep.subr.mxu0 0.0
        %483 = vmatpush1.msra.mxu0 0.0
        %484 = vmatprep.subr.mxu0 0.0
        %485 = vmatpush1.msra.mxu0 0.0
        %486 = vmatprep.subr.mxu0 0.0
        %487 = vmatpush1.msra.mxu0 0.0
        %488 = vmatprep.subr.mxu0 0.0
        %489 = vmatpush1.msra.mxu0 0.0
        %490 = vmatprep.subr.mxu0 0.0
        %491 = vmatpush1.msra.mxu0 0.0
        %492 = vmatprep.subr.mxu0 0.0
        %493 = vmatpush1.msra.mxu0 0.0
        %494 = vmatprep.subr.mxu0 0.0
        %495 = vmatpush1.msra.mxu0 0.0
        %496 = vmatprep.mubr.f32.mxu0 0.0
        %497 = vmatmul.mubr.f32.gmra.mrb[0].mxu0 %v421
        %v498 = vpop.f32.mrb[0].mxu0
        %v499 = vadd.f32 0.0, %v498
        %v500 = vpop.f32.mrb[0].mxu0
        %501 = vmatprep.mubr.f32.mxu0 0.0
        %502 = vmatmul.mubr.f32.gmra.mrb[0].mxu0 %v424
        %v503 = vpop.f32.mrb[0].mxu0
        %v504 = vadd.f32 0.0, %v503
        %v505 = vpop.f32.mrb[0].mxu0
        %506 = vmatprep.mubr.f32.mxu0 0.0
        %507 = vmatmul.mubr.f32.gmra.mrb[0].mxu0 %v427
        %v508 = vpop.f32.mrb[0].mxu0
        %v509 = vadd.f32 0.0, %v508
        %v510 = vpop.f32.mrb[0].mxu0
        %511 = vmatprep.mubr.f32.mxu0 0.0
        %512 = vmatmul.mubr.f32.gmra.mrb[0].mxu0 %v430
        %v513 = vpop.f32.mrb[0].mxu0
        %v514 = vadd.f32 0.0, %v513
        %v515 = vpop.f32.mrb[0].mxu0
        %516 = vdwg.mxu0
        %v517 = vadd.f32 %v383, %v499
        %v518 = vadd.f32 %v384, %v504
        %v519 = vadd.f32 %v385, %v509
        %v520 = vadd.f32 %v386, %v514
        %vm521 = vcmask 261120
        %522 = vst.msk [vmem:[%s334] sm:$0xff] %vm521, %v517
        %523 = vst.msk [vmem:[%s334 + $0x8] sm:$0xff] %vm521, %v518
        %524 = vst.msk [vmem:[%s334 + $0x10] sm:$0xff] %vm521, %v519
        %525 = vst.msk [vmem:[%s334 + $0x18] sm:$0xff] %vm521, %v520
        %v526 = vld [vmem:[%s341] sm:$0xff]
        %v527 = vld [vmem:[%s341 + $0x8] sm:$0xff]
        %v528 = vld [vmem:[%s341 + $0x10] sm:$0xff]
        %v529 = vld [vmem:[%s341 + $0x18] sm:$0xff]
        %530 = vxpose.xlu0.b32.start [1/16] %v382, 128
        %531 = vxpose.xlu0.b32.cont [2/16] 0.0, 128
        %532 = vxpose.xlu0.b32.cont [3/16] 0.0, 128
        %533 = vxpose.xlu0.b32.cont [4/16] 0.0, 128
        %534 = vxpose.xlu0.b32.cont [5/16] 0.0, 128
        %535 = vxpose.xlu0.b32.cont [6/16] 0.0, 128
        %536 = vxpose.xlu0.b32.cont [7/16] 0.0, 128
        %537 = vxpose.xlu0.b32.cont [8/16] 0.0, 128
        %538 = vxpose.xlu0.b32.cont [9/16] 0.0, 128
        %539 = vxpose.xlu0.b32.cont [10/16] 0.0, 128
        %540 = vxpose.xlu0.b32.cont [11/16] 0.0, 128
        %541 = vxpose.xlu0.b32.cont [12/16] 0.0, 128
        %542 = vxpose.xlu0.b32.cont [13/16] 0.0, 128
        %543 = vxpose.xlu0.b32.cont [14/16] 0.0, 128
        %544 = vxpose.xlu0.b32.cont [15/16] 0.0, 128
        %545 = vxpose.xlu0.b32.end [16/16] 0.0, 128
        %v546 = vpop.trf.xlu0
        %v547 = vpop.trf.xlu0
        %v548 = vpop.trf.xlu0
        %v549 = vpop.trf.xlu0
        %v550 = vpop.trf.xlu0
        %v551 = vpop.trf.xlu0
        %v552 = vpop.trf.xlu0
        %v553 = vpop.trf.xlu0
        %v554 = vpop.trf.xlu0
        %v555 = vpop.trf.xlu0
        %v556 = vpop.trf.xlu0
        %v557 = vpop.trf.xlu0
        %v558 = vpop.trf.xlu0
        %v559 = vpop.trf.xlu0
        %v560 = vpop.trf.xlu0
        %v561 = vpop.trf.xlu0
        %v563 = vsel %vm419, %v546, 0
        %v566 = vsel %vm419, %v547, 0
        %v569 = vsel %vm419, %v548, 0
        %v572 = vsel %vm419, %v549, 0
        %574 = vmatprep.subr.mxu0 0.0
        %575 = vmatpush1.msra.mxu0 %v382
        %576 = vmatprep.subr.mxu0 0.0
        %577 = vmatpush1.msra.mxu0 0.0
        %578 = vmatprep.subr.mxu0 0.0
        %579 = vmatpush1.msra.mxu0 0.0
        %580 = vmatprep.subr.mxu0 0.0
        %581 = vmatpush1.msra.mxu0 0.0
        %582 = vmatprep.subr.mxu0 0.0
        %583 = vmatpush1.msra.mxu0 0.0
        %584 = vmatprep.subr.mxu0 0.0
        %585 = vmatpush1.msra.mxu0 0.0
        %586 = vmatprep.subr.mxu0 0.0
        %587 = vmatpush1.msra.mxu0 0.0
        %588 = vmatprep.subr.mxu0 0.0
        %589 = vmatpush1.msra.mxu0 0.0
        %590 = vmatprep.subr.mxu0 0.0
        %591 = vmatpush1.msra.mxu0 0.0
        %592 = vmatprep.subr.mxu0 0.0
        %593 = vmatpush1.msra.mxu0 0.0
        %594 = vmatprep.subr.mxu0 0.0
        %595 = vmatpush1.msra.mxu0 0.0
        %596 = vmatprep.subr.mxu0 0.0
        %597 = vmatpush1.msra.mxu0 0.0
        %598 = vmatprep.subr.mxu0 0.0
        %599 = vmatpush1.msra.mxu0 0.0
        %600 = vmatprep.subr.mxu0 0.0
        %601 = vmatpush1.msra.mxu0 0.0
        %602 = vmatprep.subr.mxu0 0.0
        %603 = vmatpush1.msra.mxu0 0.0
        %604 = vmatprep.subr.mxu0 0.0
        %605 = vmatpush1.msra.mxu0 0.0
        %606 = vmatprep.subr.mxu0 0.0
        %607 = vmatpush1.msra.mxu0 0.0
        %608 = vmatprep.subr.mxu0 0.0
        %609 = vmatpush1.msra.mxu0 0.0
        %610 = vmatprep.subr.mxu0 0.0
        %611 = vmatpush1.msra.mxu0 0.0
        %612 = vmatprep.subr.mxu0 0.0
        %613 = vmatpush1.msra.mxu0 0.0
        %614 = vmatprep.subr.mxu0 0.0
        %615 = vmatpush1.msra.mxu0 0.0
        %616 = vmatprep.subr.mxu0 0.0
        %617 = vmatpush1.msra.mxu0 0.0
        %618 = vmatprep.subr.mxu0 0.0
        %619 = vmatpush1.msra.mxu0 0.0
        %620 = vmatprep.subr.mxu0 0.0
        %621 = vmatpush1.msra.mxu0 0.0
        %622 = vmatprep.subr.mxu0 0.0
        %623 = vmatpush1.msra.mxu0 0.0
        %624 = vmatprep.subr.mxu0 0.0
        %625 = vmatpush1.msra.mxu0 0.0
        %626 = vmatprep.subr.mxu0 0.0
        %627 = vmatpush1.msra.mxu0 0.0
        %628 = vmatprep.subr.mxu0 0.0
        %629 = vmatpush1.msra.mxu0 0.0
        %630 = vmatprep.subr.mxu0 0.0
        %631 = vmatpush1.msra.mxu0 0.0
        %632 = vmatprep.subr.mxu0 0.0
        %633 = vmatpush1.msra.mxu0 0.0
        %634 = vmatprep.subr.mxu0 0.0
        %635 = vmatpush1.msra.mxu0 0.0
        %636 = vmatprep.subr.mxu0 0.0
        %637 = vmatpush1.msra.mxu0 0.0
        %638 = vmatprep.mubr.f32.mxu0 0.0
        %639 = vmatmul.mubr.f32.gmra.mrb[0].mxu0 %v563
        %v640 = vpop.f32.mrb[0].mxu0
        %v641 = vadd.f32 0.0, %v640
        %v642 = vpop.f32.mrb[0].mxu0
        %643 = vmatprep.mubr.f32.mxu0 0.0
        %644 = vmatmul.mubr.f32.gmra.mrb[0].mxu0 %v566
        %v645 = vpop.f32.mrb[0].mxu0
        %v646 = vadd.f32 0.0, %v645
        %v647 = vpop.f32.mrb[0].mxu0
        %648 = vmatprep.mubr.f32.mxu0 0.0
        %649 = vmatmul.mubr.f32.gmra.mrb[0].mxu0 %v569
        %v650 = vpop.f32.mrb[0].mxu0
        %v651 = vadd.f32 0.0, %v650
        %v652 = vpop.f32.mrb[0].mxu0
        %653 = vmatprep.mubr.f32.mxu0 0.0
        %654 = vmatmul.mubr.f32.gmra.mrb[0].mxu0 %v572
        %v655 = vpop.f32.mrb[0].mxu0
        %v656 = vadd.f32 0.0, %v655
        %v657 = vpop.f32.mrb[0].mxu0
        %658 = vdwg.mxu0
        %v659 = vadd.f32 %v526, %v641
        %v660 = vadd.f32 %v527, %v646
        %v661 = vadd.f32 %v528, %v651
        %v662 = vadd.f32 %v529, %v656
        %663 = vst.msk [vmem:[%s341] sm:$0xff] %vm521, %v659
        %664 = vst.msk [vmem:[%s341 + $0x8] sm:$0xff] %vm521, %v660
        %665 = vst.msk [vmem:[%s341 + $0x10] sm:$0xff] %vm521, %v661
        %666 = vst.msk [vmem:[%s341 + $0x18] sm:$0xff] %vm521, %v662
        %v667 = vld [vmem:[%s347] sm:$0x1]
        %v668 = vsel %vm521, %v381, 0.0
        %v669 = vrot.slane %v668, 4
        %v670 = vadd.f32 %v668, %v669
        %v671 = vrot.slane %v670, 2
        %v672 = vadd.f32 %v670, %v671
        %v673 = vrot.slane %v672, 1
        %v674 = vadd.f32 %v672, %v673
        %v675 = vadd.f32 %v667, %v674
        %vm676 = vcmask 253952
        %677 = vst.msk [vmem:[%s347] sm:$0x1] %vm676, %v675
        %v678 = vld [vmem:[%s353] sm:$0x1]
        %v679 = vsel %vm521, %v382, 0.0
        %v680 = vrot.slane %v679, 4
        %v681 = vadd.f32 %v679, %v680
        %v682 = vrot.slane %v681, 2
        %v683 = vadd.f32 %v681, %v682
        %v684 = vrot.slane %v683, 1
        %v685 = vadd.f32 %v683, %v684
        %v686 = vadd.f32 %v678, %v685
        %687 = vst.msk [vmem:[%s353] sm:$0x1] %vm676, %v686
        %v688 = vsub.f32 %v381, %v382
        %v689 = vld [vmem:[%s359] sm:$0x1]
        %v690 = vmul.f32 %v688, %v688
        %v691 = vsel %vm521, %v690, 0.0
        %v692 = vrot.slane %v691, 4
        %v693 = vadd.f32 %v691, %v692
        %v694 = vrot.slane %v693, 2
        %v695 = vadd.f32 %v693, %v694
        %v696 = vrot.slane %v695, 1
        %v697 = vadd.f32 %v695, %v696
        %v698 = vadd.f32 %v689, %v697
        %699 = vst.msk [vmem:[%s359] sm:$0x1] %vm676, %v698
        %s700 = sand.u32 %s113, 1
        %s701 = scalar_lea.sflag [#allocation4], %s700
        %s702 = sand.u32 %s113, 1
        %s703 = smul.addr %s702, 32
        %s704 = scalar_lea.vmem [#allocation7], %s703
        %s705 = sand.u32 %s33, 1
        %s706 = scalar_lea.sflag [#allocation9], %s705
        %s707 = sand.u32 %s139, 1
        %s708 = smul.addr %s707, 32
        %s709 = scalar_lea.vmem [#allocation8], %s708
        %s710 = sand.u32 %s33, 1
        %s711 = scalar_lea.sflag [#allocation9], %s710
        %s712 = sand.u32 %s165, 1
        %s713 = scalar_lea.vmem [#allocation10], %s712
        %s714 = sand.u32 %s33, 1
        %s715 = scalar_lea.sflag [#allocation12], %s714
        %s716 = sand.u32 %s191, 1
        %s717 = scalar_lea.vmem [#allocation11], %s716
        %s718 = sand.u32 %s33, 1
        %s719 = scalar_lea.sflag [#allocation12], %s718
        %s720 = sand.u32 %s217, 1
        %s721 = scalar_lea.vmem [#allocation13], %s720
        // Predicated region
        $region41: #{tpu_custom_call.1} parent=27 // pred_check
          %p722 = pneg %p123
        $region42: #{tpu_custom_call.1} parent=27 // pred_check_branch
          %724 = sbr.rel (%p722) target = $region44
        $region43: #{tpu_custom_call.1} parent=27 // pred_region
          %s726 = ssub.s32 512, 512
          %727 = vsyncadd %s701, %s726
          %s728 = smul.addr %s37, 4
          %s729 = smul.addr %s728, 128
          %s730 = scalar_lea.hbm %s2, %s729
          %s731 = sshll.u32 %s704, 4
          %s732 = int_to_ptr.vmem [resolvable:$true] %s731
          %737 = dma.vmem_to_hbm [thread:$0]  %s732, 512, %s730, %s701, 128, 128, 8
        $region44: #{tpu_custom_call.1} parent=27 // pred_fallthru
          _
        // Predicated region
        $region45: #{tpu_custom_call.1} parent=27 // pred_check
          %p738 = pneg %p149
        $region46: #{tpu_custom_call.1} parent=27 // pred_check_branch
          %740 = sbr.rel (%p738) target = $region48
        $region47: #{tpu_custom_call.1} parent=27 // pred_region
          %s742 = ssub.s32 512, 512
          %743 = vsyncadd %s706, %s742
          %s744 = smul.addr %s37, 4
          %s745 = smul.addr %s744, 128
          %s746 = scalar_lea.hbm %s3, %s745
          %s747 = sshll.u32 %s709, 4
          %s748 = int_to_ptr.vmem [resolvable:$true] %s747
          %753 = dma.vmem_to_hbm [thread:$0]  %s748, 512, %s746, %s706, 128, 128, 8
        $region48: #{tpu_custom_call.1} parent=27 // pred_fallthru
          _
        // Predicated region
        $region49: #{tpu_custom_call.1} parent=27 // pred_check
          %p754 = pneg %p175
        $region50: #{tpu_custom_call.1} parent=27 // pred_check_branch
          %756 = sbr.rel (%p754) target = $region52
        $region51: #{tpu_custom_call.1} parent=27 // pred_region
          %s758 = ssub.s32 16, 16
          %759 = vsyncadd %s711, %s758
          %s760 = smul.addr %s37, 16
          %s761 = scalar_lea.hbm %s4, %s760
          %s763 = sshll.u32 %s713, 4
          %s764 = int_to_ptr.vmem [resolvable:$true] %s763
          %766 = dma.vmem_to_hbm [thread:$0]  %s764, 16, %s761, %s711
        $region52: #{tpu_custom_call.1} parent=27 // pred_fallthru
          _
        // Predicated region
        $region53: #{tpu_custom_call.1} parent=27 // pred_check
          %p767 = pneg %p201
        $region54: #{tpu_custom_call.1} parent=27 // pred_check_branch
          %769 = sbr.rel (%p767) target = $region56
        $region55: #{tpu_custom_call.1} parent=27 // pred_region
          %s771 = ssub.s32 16, 16
          %772 = vsyncadd %s715, %s771
          %s773 = smul.addr %s37, 16
          %s774 = scalar_lea.hbm %s5, %s773
          %s776 = sshll.u32 %s717, 4
          %s777 = int_to_ptr.vmem [resolvable:$true] %s776
          %779 = dma.vmem_to_hbm [thread:$0]  %s777, 16, %s774, %s715
        $region56: #{tpu_custom_call.1} parent=27 // pred_fallthru
          _
        // Predicated region
        $region57: #{tpu_custom_call.1} parent=27 // pred_check
          %p780 = pneg %p227
        $region58: #{tpu_custom_call.1} parent=27 // pred_check_branch
          %782 = sbr.rel (%p780) target = $region60
        $region59: #{tpu_custom_call.1} parent=27 // pred_region
          %s784 = ssub.s32 16, 16
          %785 = vsyncadd %s719, %s784
          %s786 = smul.addr %s37, 16
          %s787 = scalar_lea.hbm %s6, %s786
          %s789 = sshll.u32 %s721, 4
          %s790 = int_to_ptr.vmem [resolvable:$true] %s789
          %792 = dma.vmem_to_hbm [thread:$0]  %s790, 16, %s787, %s719
        $region60: #{tpu_custom_call.1} parent=27 // pred_fallthru
          _
      $region28: #{tpu_custom_call.1} parent=5 // pred_fallthru
        _
      %p793 = scmp.le.s32.totalorder 2, %s28
      // Predicated region
      $region61: #{tpu_custom_call.1} parent=5 // pred_check
        %p794 = pneg %p793
      $region62: #{tpu_custom_call.1} parent=5 // pred_check_branch
        %796 = sbr.rel (%p794) target = $region64
      $region63: #{tpu_custom_call.1} parent=5 // pred_region
        %s797 = ssub.s32 %s28, 2
        // Predicated region
        $region65: #{tpu_custom_call.1} parent=63 // pred_check
          %p798 = pneg %p129
        $region66: #{tpu_custom_call.1} parent=63 // pred_check_branch
          %800 = sbr.rel (%p798) target = $region68
        $region67: #{tpu_custom_call.1} parent=63 // pred_region
          %s801 = sand.u32 %s114, 1
          %s802 = scalar_lea.sflag [#allocation4], %s801
          %s803 = sand.u32 %s114, 1
          %s804 = smul.addr %s803, 32
          %s805 = scalar_lea.vmem [#allocation7], %s804
          %806 = dma.done %s802, 512
        $region68: #{tpu_custom_call.1} parent=63 // pred_fallthru
          _
        // Predicated region
        $region69: #{tpu_custom_call.1} parent=63 // pred_check
          %p807 = pneg %p155
        $region70: #{tpu_custom_call.1} parent=63 // pred_check_branch
          %809 = sbr.rel (%p807) target = $region72
        $region71: #{tpu_custom_call.1} parent=63 // pred_region
          %s810 = sand.u32 %s34, 1
          %s811 = scalar_lea.sflag [#allocation9], %s810
          %s812 = sand.u32 %s140, 1
          %s813 = smul.addr %s812, 32
          %s814 = scalar_lea.vmem [#allocation8], %s813
          %815 = dma.done %s811, 512
        $region72: #{tpu_custom_call.1} parent=63 // pred_fallthru
          _
        // Predicated region
        $region73: #{tpu_custom_call.1} parent=63 // pred_check
          %p816 = pneg %p181
        $region74: #{tpu_custom_call.1} parent=63 // pred_check_branch
          %818 = sbr.rel (%p816) target = $region76
        $region75: #{tpu_custom_call.1} parent=63 // pred_region
          %s819 = sand.u32 %s34, 1
          %s820 = scalar_lea.sflag [#allocation9], %s819
          %s821 = sand.u32 %s166, 1
          %s822 = scalar_lea.vmem [#allocation10], %s821
          %823 = dma.done %s820, 16
        $region76: #{tpu_custom_call.1} parent=63 // pred_fallthru
          _
        // Predicated region
        $region77: #{tpu_custom_call.1} parent=63 // pred_check
          %p824 = pneg %p207
        $region78: #{tpu_custom_call.1} parent=63 // pred_check_branch
          %826 = sbr.rel (%p824) target = $region80
        $region79: #{tpu_custom_call.1} parent=63 // pred_region
          %s827 = sand.u32 %s34, 1
          %s828 = scalar_lea.sflag [#allocation12], %s827
          %s829 = sand.u32 %s192, 1
          %s830 = scalar_lea.vmem [#allocation11], %s829
          %831 = dma.done %s828, 16
        $region80: #{tpu_custom_call.1} parent=63 // pred_fallthru
          _
        // Predicated region
        $region81: #{tpu_custom_call.1} parent=63 // pred_check
          %p832 = pneg %p233
        $region82: #{tpu_custom_call.1} parent=63 // pred_check_branch
          %834 = sbr.rel (%p832) target = $region84
        $region83: #{tpu_custom_call.1} parent=63 // pred_region
          %s835 = sand.u32 %s34, 1
          %s836 = scalar_lea.sflag [#allocation12], %s835
          %s837 = sand.u32 %s218, 1
          %s838 = scalar_lea.vmem [#allocation13], %s837
          %839 = dma.done %s836, 16
        $region84: #{tpu_custom_call.1} parent=63 // pred_fallthru
          _
      $region64: #{tpu_custom_call.1} parent=5 // pred_fallthru
        _
    $region6: #{tpu_custom_call.1} parent=1 // loop_footer
      %s32 = sadd.s32 1, %s28
    $region7: #{tpu_custom_call.1} parent=1 // loop_footer_branch
      %27 = sbr.rel target = $region3
    $region8: #{tpu_custom_call.1} parent=1 // loop_exit
      _
    %840 = vsyncpa [#allocation3], 1
    %s841 = scalar_lea.sflag [#allocation3], 1
    %842 = vsyncpa %s841, 1
    %843 = vsyncpa [#allocation6], 1
    %s844 = scalar_lea.sflag [#allocation6], 1
    %845 = vsyncpa %s844, 1
    %846 = vsyncpa [#allocation4], 1
    %s847 = scalar_lea.sflag [#allocation4], 1
    %848 = vsyncpa %s847, 1
    %849 = vsyncpa [#allocation9], 1
    %s850 = scalar_lea.sflag [#allocation9], 1
    %851 = vsyncpa %s850, 1
    %852 = vsyncpa [#allocation12], 1
    %s853 = scalar_lea.sflag [#allocation12], 1
    %854 = vsyncpa %s853, 1

</llo_original>
